<compile_context>
chip_gen: v6e
topology: v6e:2x2x1
jax: 0.10.0
libtpu: 0.0.40
codegen_flags: <defaults>
</compile_context>

<pallas_src>
import functools

import jax
import jax.numpy as jnp
from jax.experimental import pallas as pl
from jax.experimental.pallas import tpu as pltpu


# Per-input-block byte budget (per buffer). Double-buffered 2 inputs => 4x this of VMEM.
_MAX_BLOCK_BYTES = 8 * 1024 * 1024
# Cap on the lane-axis tile so each (8, tile_n) f32 accumulator stays <= 2 MiB.
_MAX_LANE_TILE = 64 * 1024
# 2 inputs * 2 bufs * 8 MiB + 2 accs * 2 MiB + tiny output  ~= 36 MiB  < 48 MiB.
_VMEM_LIMIT_BYTES = 48 * 1024 * 1024


def _round_up(x: int, m: int) -> int:
    return (x + m - 1) // m * m


def _choose_tiles(B: int, N: int, itemsize: int):
    """Pick (tile_b, tile_n): lane-contiguous, budget-limited, no divisibility demand."""
    max_elems = _MAX_BLOCK_BYTES // itemsize

    # Lane (asset) axis: prefer full-width rows -> multi-KB contiguous DMA descriptors.
    if N <= 128:
        tile_n = N                                       # full dim (ok even if < 128)
    else:
        tile_n = min(_round_up(N, 128), _MAX_LANE_TILE,
                     max(128, (max_elems // 8) // 128 * 128))

    # Sublane (batch) axis: as many rows as the per-block budget allows.
    max_b = max(8, (max_elems // tile_n) // 8 * 8)
    if B <= 8:
        tile_b = B                                       # full dim (ok even if < 8)
    else:
        tile_b = min(_round_up(B, 8), max_b)

    # Give megacore (v7x: 2 TensorCores) at least two batch tiles to split.
    if B >= 16 and pl.cdiv(B, tile_b) == 1:
        tile_b = _round_up(pl.cdiv(B, 2), 8)

    return tile_b, tile_n


def _turnover_kernel(cur_ref, tgt_ref, out_ref, acc_d_ref, *acc_p_refs,
                     batch, assets, with_impact, mask_rows, mask_cols):
    """Grid = (batch tiles [parallel], asset tiles [arbitrary / reduction]).

    out_ref is a (1, 8, 128) per-batch-tile block; only [0, 0, 0] (sum of d) and
    [0, 0, 1] (sum of d**1.5) are non-zero. Partials are combined in the wrapper.
    """
    tile_b, tile_n = cur_ref.shape
    acc_rows = acc_d_ref.shape[0]
    j = pl.program_id(1)

    @pl.when(j == 0)
    def _init():
        acc_d_ref[...] = jnp.zeros_like(acc_d_ref)
        if with_impact:
            acc_p_refs[0][...] = jnp.zeros_like(acc_p_refs[0])

    cur = cur_ref[...]
    tgt = tgt_ref[...]
    if cur.dtype != jnp.float32:                 # cast only when needed (trace-time)
        cur = cur.astype(jnp.float32)
        tgt = tgt.astype(jnp.float32)

    d = jnp.abs(tgt - cur)                       # position_changes

    # Mask ragged tail blocks (replaces wrapper-side jnp.pad; OOB lanes contribute 0).
    valid = None
    if mask_rows:
        rows = (jax.lax.broadcasted_iota(jnp.int32, (tile_b, tile_n), 0)
                + pl.program_id(0) * tile_b)
        valid = rows < batch
    if mask_cols:
        cols = (jax.lax.broadcasted_iota(jnp.int32, (tile_b, tile_n), 1)
                + j * tile_n)
        cmask = cols < assets
        valid = cmask if valid is None else jnp.logical_and(valid, cmask)
    if valid is not None:
        d = jnp.where(valid, d, 0.0)

    if with_impact:
        p = d * jnp.sqrt(d)                      # d ** 1.5 (EUP sqrt + VPU mul)

    # Sublane-preserving partial reduction (tile_b, n) -> (acc_rows, n):
    # pure VALU tree-adds, no XLU, no per-vreg accumulator reload/restore.
    if tile_b > acc_rows:
        d = d.reshape(tile_b // acc_rows, acc_rows, tile_n).sum(axis=0)
        if with_impact:
            p = p.reshape(tile_b // acc_rows, acc_rows, tile_n).sum(axis=0)

    acc_d_ref[...] += d
    if with_impact:
        acc_p_refs[0][...] += p

    @pl.when(j == pl.num_programs(1) - 1)
    def _finalize():
        sum_d = jnp.sum(acc_d_ref[...])          # one XLU reduce per batch tile
        row = jax.lax.broadcasted_iota(jnp.int32, (8, 128), 0)
        lane = jax.lax.broadcasted_iota(jnp.int32, (8, 128), 1)
        blk = jnp.where(jnp.logical_and(row == 0, lane == 0), sum_d, 0.0)
        if with_impact:
            sum_p = jnp.sum(acc_p_refs[0][...])
            blk = blk + jnp.where(jnp.logical_and(row == 0, lane == 1), sum_p, 0.0)
        out_ref[...] = blk.reshape(1, 8, 128)


def turnover_regularization(current_positions,
                            previous_positions,
                            cost_per_trade: float = 0.001,
                            market_impact_weight: float = 0.0001):
    B, N = current_positions.shape
    assert previous_positions.shape == (B, N)

    itemsize = jnp.dtype(current_positions.dtype).itemsize
    tile_b, tile_n = _choose_tiles(B, N, itemsize)
    grid_b = pl.cdiv(B, tile_b)
    grid_n = pl.cdiv(N, tile_n)

    with_impact = float(market_impact_weight) != 0.0
    mask_rows = (B % tile_b) != 0
    mask_cols = (N % tile_n) != 0
    acc_rows = 8 if tile_b % 8 == 0 else tile_b

    kernel = functools.partial(
        _turnover_kernel,
        batch=B, assets=N, with_impact=with_impact,
        mask_rows=mask_rows, mask_cols=mask_cols)

    scratch = [pltpu.VMEM((acc_rows, tile_n), jnp.float32)]      # acc: sum of d
    if with_impact:
        scratch.append(pltpu.VMEM((acc_rows, tile_n), jnp.float32))  # acc: sum of d^1.5

    partials = pl.pallas_call(
        kernel,
        out_shape=jax.ShapeDtypeStruct((grid_b, 8, 128), jnp.float32),
        grid_spec=pltpu.PrefetchScalarGridSpec(
            num_scalar_prefetch=0,
            grid=(grid_b, grid_n),
            in_specs=[
                pl.BlockSpec((tile_b, tile_n), lambda i, j: (i, j)),
                pl.BlockSpec((tile_b, tile_n), lambda i, j: (i, j)),
            ],
            out_specs=pl.BlockSpec((1, 8, 128), lambda i, j: (i, 0, 0)),
            scratch_shapes=scratch,
        ),
        compiler_params=pltpu.CompilerParams(
            # batch-tile axis parallel (v7x megacore); reduction axis sequential.
            dimension_semantics=("parallel", "arbitrary"),
            vmem_limit_bytes=_VMEM_LIMIT_BYTES,
        ),
    )(current_positions, previous_positions)

    # Tiny scalar epilogue: combine per-batch-tile partial sums (all outputs are
    # linear in sum(d) and sum(d**1.5)).
    inv_b = jnp.float32(1.0 / B)                 # mean over the ORIGINAL batch
    sum_d = jnp.sum(partials[:, 0, 0])
    sum_p = jnp.sum(partials[:, 0, 1])
    base = sum_d * jnp.float32(cost_per_trade) * inv_b
    impact = sum_p * jnp.float32(market_impact_weight) * inv_b
    liq = jnp.float32(0.0)                       # market_cap is None in legacy path
    return {
        "transaction_cost_penalty": base + impact + liq,
        "base_costs": base,
        "market_impact_costs": impact,
        "liquidity_costs": liq,
        "total_turnover": sum_d * inv_b,
    }


def _reference(cur, prev, cost_per_trade=0.001, market_impact_weight=0.0001):
    d = jnp.abs(prev - cur)
    base = d * cost_per_trade
    impact = market_impact_weight * d ** 1.5
    liq = jnp.zeros_like(d)
    total = base + impact + liq
    return {
        "transaction_cost_penalty": jnp.mean(jnp.sum(total, axis=1)),
        "base_costs": jnp.mean(jnp.sum(base, axis=1)),
        "market_impact_costs": jnp.mean(jnp.sum(impact, axis=1)),
        "liquidity_costs": jnp.mean(jnp.sum(liq, axis=1)),
        "total_turnover": jnp.mean(jnp.sum(d, axis=1)),
    }


if __name__ == "__main__":
    key = jax.random.PRNGKey(0)
    k1, k2 = jax.random.split(key)
    batch, num_assets = 8, 256

    # current / previous portfolio weights (arbitrary synthetic values)
    current_positions = jax.random.normal(k1, (batch, num_assets), dtype=jnp.float32) * 0.02
    previous_positions = jax.random.normal(k2, (batch, num_assets), dtype=jnp.float32) * 0.02

    result = turnover_regularization(current_positions, previous_positions)
    result = jax.block_until_ready(result)

    ref = _reference(current_positions, previous_positions)
    for k in ref:
        assert jnp.allclose(result[k], ref[k], rtol=1e-5, atol=1e-7), (
            k, result[k], ref[k])

    print("KERNEL_OK")
</pallas_src>

<mosaic_0001>
module attributes {stable_mosaic.version = 11 : i64} {
  func.func @_turnover_kernel(%arg0: i32, %arg1: i32, %arg2: memref<8x256xf32, #tpu.memory_space<vmem>>, %arg3: memref<8x256xf32, #tpu.memory_space<vmem>>, %arg4: memref<1x8x128xf32, #tpu.memory_space<vmem>>, %arg5: memref<8x256xf32, #tpu.memory_space<vmem>>, %arg6: memref<8x256xf32, #tpu.memory_space<vmem>>) attributes {dimension_semantics = [#tpu.dimension_semantics<parallel>, #tpu.dimension_semantics<arbitrary>], iteration_bounds = array<i64: 1, 1>, scalar_prefetch = 0 : i64, scratch_operands = 2 : i64, tpu.core_type = #tpu.core_type<tc>, window_params = [{transform_indices = @transform_0, window_bounds = array<i64: 8, 256>}, {transform_indices = @transform_1, window_bounds = array<i64: 8, 256>}, {transform_indices = @transform_2, window_bounds = array<i64: 1, 8, 128>}]} {
    %c0_i32 = arith.constant 0 : i32
    %0 = arith.cmpi eq, %arg1, %c0_i32 : i32
    %1 = arith.extui %0 : i1 to i32
    %c0_i32_0 = arith.constant 0 : i32
    %2 = arith.cmpi ne, %1, %c0_i32_0 : i32
    scf.if %2 {
      %cst = arith.constant 0.000000e+00 : f32
      %18 = vector.broadcast %cst : f32 to vector<8x256xf32>
      %c0_14 = arith.constant 0 : index
      %c0_15 = arith.constant 0 : index
      %19 = vector.load %arg5[%c0_14, %c0_15] : memref<8x256xf32, #tpu.memory_space<vmem>>, vector<8x256xf32>
      tpu.vector_store %arg5[%c0_14, %c0_15], %18 {strides = array<i32>} : memref<8x256xf32, #tpu.memory_space<vmem>>, vector<8x256xf32>,
      %cst_16 = arith.constant 0.000000e+00 : f32
      %20 = vector.broadcast %cst_16 : f32 to vector<8x256xf32>
      %c0_17 = arith.constant 0 : index
      %c0_18 = arith.constant 0 : index
      %21 = vector.load %arg6[%c0_17, %c0_18] : memref<8x256xf32, #tpu.memory_space<vmem>>, vector<8x256xf32>
      tpu.vector_store %arg6[%c0_17, %c0_18], %20 {strides = array<i32>} : memref<8x256xf32, #tpu.memory_space<vmem>>, vector<8x256xf32>,
    } else {
    }
    %c0 = arith.constant 0 : index
    %c0_1 = arith.constant 0 : index
    %3 = vector.load %arg2[%c0, %c0_1] : memref<8x256xf32, #tpu.memory_space<vmem>>, vector<8x256xf32>
    %c0_2 = arith.constant 0 : index
    %c0_3 = arith.constant 0 : index
    %4 = vector.load %arg3[%c0_2, %c0_3] : memref<8x256xf32, #tpu.memory_space<vmem>>, vector<8x256xf32>
    %5 = arith.subf %4, %3 : vector<8x256xf32>
    %6 = math.absf %5 : vector<8x256xf32>
    %7 = math.sqrt %6 : vector<8x256xf32>
    %8 = arith.mulf %6, %7 : vector<8x256xf32>
    %c0_4 = arith.constant 0 : index
    %c0_5 = arith.constant 0 : index
    %9 = vector.load %arg5[%c0_4, %c0_5] : memref<8x256xf32, #tpu.memory_space<vmem>>, vector<8x256xf32>
    %10 = arith.addf %9, %6 : vector<8x256xf32>
    %c0_6 = arith.constant 0 : index
    %c0_7 = arith.constant 0 : index
    %11 = vector.load %arg5[%c0_6, %c0_7] : memref<8x256xf32, #tpu.memory_space<vmem>>, vector<8x256xf32>
    tpu.vector_store %arg5[%c0_6, %c0_7], %10 {strides = array<i32>} : memref<8x256xf32, #tpu.memory_space<vmem>>, vector<8x256xf32>,
    %c0_8 = arith.constant 0 : index
    %c0_9 = arith.constant 0 : index
    %12 = vector.load %arg6[%c0_8, %c0_9] : memref<8x256xf32, #tpu.memory_space<vmem>>, vector<8x256xf32>
    %13 = arith.addf %12, %8 : vector<8x256xf32>
    %c0_10 = arith.constant 0 : index
    %c0_11 = arith.constant 0 : index
    %14 = vector.load %arg6[%c0_10, %c0_11] : memref<8x256xf32, #tpu.memory_space<vmem>>, vector<8x256xf32>
    tpu.vector_store %arg6[%c0_10, %c0_11], %13 {strides = array<i32>} : memref<8x256xf32, #tpu.memory_space<vmem>>, vector<8x256xf32>,
    %c0_i32_12 = arith.constant 0 : i32
    %15 = arith.cmpi eq, %arg1, %c0_i32_12 : i32
    %16 = arith.extui %15 : i1 to i32
    %c0_i32_13 = arith.constant 0 : i32
    %17 = arith.cmpi ne, %16, %c0_i32_13 : i32
    scf.if %17 {
      %c0_14 = arith.constant 0 : index
      %c0_15 = arith.constant 0 : index
      %18 = vector.load %arg5[%c0_14, %c0_15] : memref<8x256xf32, #tpu.memory_space<vmem>>, vector<8x256xf32>
      %19 = vector.shape_cast %18 : vector<8x256xf32> to vector<1x8x256xf32>
      %cst = arith.constant dense<0.000000e+00> : vector<1xf32>
      %20 = vector.multi_reduction <add>, %19, %cst [1, 2] : vector<1x8x256xf32> to vector<1xf32>
      %21 = vector.shape_cast %20 : vector<1xf32> to vector<1x1x1xf32>
      %22 = vector.extract %21[0, 0, 0] : f32 from vector<1x1x1xf32>
      %23 = tpu.iota {dimensions = array<i32: 0>} : vector<8x128xi32>
      %24 = tpu.iota {dimensions = array<i32: 1>} : vector<8x128xi32>
      %c0_i32_16 = arith.constant 0 : i32
      %25 = vector.broadcast %c0_i32_16 : i32 to vector<8x128xi32>
      %26 = arith.cmpi eq, %23, %25 : vector<8x128xi32>
      %c0_i32_17 = arith.constant 0 : i32
      %27 = vector.broadcast %c0_i32_17 : i32 to vector<8x128xi32>
      %28 = arith.cmpi eq, %24, %27 : vector<8x128xi32>
      %29 = arith.andi %26, %28 : vector<8x128xi1>
      %cst_18 = arith.constant 0.000000e+00 : f32
      %30 = vector.broadcast %22 : f32 to vector<8x128xf32>
      %31 = vector.broadcast %cst_18 : f32 to vector<8x128xf32>
      %32 = arith.select %29, %30, %31 : vector<8x128xi1>, vector<8x128xf32>
      %c0_19 = arith.constant 0 : index
      %c0_20 = arith.constant 0 : index
      %33 = vector.load %arg6[%c0_19, %c0_20] : memref<8x256xf32, #tpu.memory_space<vmem>>, vector<8x256xf32>
      %34 = vector.shape_cast %33 : vector<8x256xf32> to vector<1x8x256xf32>
      %cst_21 = arith.constant dense<0.000000e+00> : vector<1xf32>
      %35 = vector.multi_reduction <add>, %34, %cst_21 [1, 2] : vector<1x8x256xf32> to vector<1xf32>
      %36 = vector.shape_cast %35 : vector<1xf32> to vector<1x1x1xf32>
      %37 = vector.extract %36[0, 0, 0] : f32 from vector<1x1x1xf32>
      %c0_i32_22 = arith.constant 0 : i32
      %38 = vector.broadcast %c0_i32_22 : i32 to vector<8x128xi32>
      %39 = arith.cmpi eq, %23, %38 : vector<8x128xi32>
      %c1_i32 = arith.constant 1 : i32
      %40 = vector.broadcast %c1_i32 : i32 to vector<8x128xi32>
      %41 = arith.cmpi eq, %24, %40 : vector<8x128xi32>
      %42 = arith.andi %39, %41 : vector<8x128xi1>
      %cst_23 = arith.constant 0.000000e+00 : f32
      %43 = vector.broadcast %37 : f32 to vector<8x128xf32>
      %44 = vector.broadcast %cst_23 : f32 to vector<8x128xf32>
      %45 = arith.select %42, %43, %44 : vector<8x128xi1>, vector<8x128xf32>
      %46 = arith.addf %32, %45 : vector<8x128xf32>
      %47 = vector.shape_cast %46 : vector<8x128xf32> to vector<1x8x128xf32>
      %c0_24 = arith.constant 0 : index
      %c0_25 = arith.constant 0 : index
      %c0_26 = arith.constant 0 : index
      %48 = vector.load %arg4[%c0_24, %c0_25, %c0_26] : memref<1x8x128xf32, #tpu.memory_space<vmem>>, vector<1x8x128xf32>
      tpu.vector_store %arg4[%c0_24, %c0_25, %c0_26], %47 {strides = array<i32>} : memref<1x8x128xf32, #tpu.memory_space<vmem>>, vector<1x8x128xf32>,
    } else {
    }
    return
  }
  func.func @transform_0(%arg0: i32, %arg1: i32) -> (i32, i32) {
    %c0_i32 = arith.constant 0 : i32
    return %arg0, %arg1 : i32, i32
  }
  func.func @transform_1(%arg0: i32, %arg1: i32) -> (i32, i32) {
    %c0_i32 = arith.constant 0 : i32
    return %arg0, %arg1 : i32, i32
  }
  func.func @transform_2(%arg0: i32, %arg1: i32) -> (i32, i32, i32) {
    %c0_i32 = arith.constant 0 : i32
    %c0_i32_0 = arith.constant 0 : i32
    %c0_i32_1 = arith.constant 0 : i32
    return %arg0, %c0_i32, %c0_i32_0 : i32, i32, i32
  }
}

</mosaic_0001>

<llo_original>
// kernel: tpu_custom_call.1
$region0: #{tpu_custom_call.1}
  #allocation0 [shape = 'u32[]', space=smem, size = 0x4, offset = 0x4, fixed_abs, tag = 'smem constant byte address 0x4 - core index']
  #allocation1 [shape = 'u32[144,128]{1,0:T(1,128)}', space=vmem, size = 0x12000, scoped, tag = 'internal scratch']
  #allocation2 [shape = 'f32[8,256]{1,0:T(8,128)}', space=vmem, size = 0x2000, scoped, tag = 'scratch operand']
  #allocation3 [shape = 'f32[8,256]{1,0:T(8,128)}', space=vmem, size = 0x2000, scoped, tag = 'scratch operand']
  %s0 = inlined_call_operand.hbm [shape: f32[8,256], index: 0, kind: input, shape index: {}]
  %s1 = inlined_call_operand.hbm [shape: f32[8,256], index: 1, kind: input, shape index: {}]
  %s2 = inlined_call_operand.hbm [shape: f32[1,8,128], index: 2, kind: output, shape index: {}]
  %s3 = sld [smem:[#allocation0]]
  $region34: #{tpu_custom_call.1} parent=0
    _
  %s5 = ssub.s32 1, %s3
  %s6 = scalar_select 0, %s5, %s3
  $region1: #{tpu_custom_call.1} parent=0
    #allocation4 [shape = 'u8[8192]{0}', space=vmem, size = 0x2000, scoped, tag = 'input window, operand 0, single buffered']
    #allocation5 [shape = 's32[1]{0}', space=sflag, size = 0x4, scoped, tag = 'scoped memory for tpu_custom_call.1']
    #allocation6 [shape = 's32[1]{0}', space=sflag, size = 0x4, scoped, tag = 'scoped memory for tpu_custom_call.1']
    #allocation7 [shape = 'u8[8192]{0}', space=vmem, size = 0x2000, scoped, tag = 'input window, operand 1, single buffered']
    #allocation8 [shape = 's32[1]{0}', space=sflag, size = 0x4, scoped, tag = 'scoped memory for tpu_custom_call.1']
    #allocation9 [shape = 'u8[4096]{0}', space=vmem, size = 0x1000, scoped, tag = 'output window, operand 0, single buffered']
    %7 = vsyncpa [#allocation5], 0
    %8 = vsyncpa [#allocation8], 0
    %9 = vsyncpa [#allocation6], 0
    // Predicated region
    $region2: #{tpu_custom_call.1} parent=1 // pred_check
      _
    $region3: #{tpu_custom_call.1} parent=1 // pred_check_branch
      %11 = sbr.rel (0) target = $region5
    $region4: #{tpu_custom_call.1} parent=1 // pred_region
      %s13 = ssub.s32 256, 256
      %14 = vsyncadd [#allocation5], %s13
      %s16 = sshll.u32 [#allocation4], 4
      %s17 = int_to_ptr.vmem [resolvable:$true] %s16
      %19 = dma.hbm_to_vmem [thread:$0]  %s0, 256, %s17, [#allocation5]
    $region5: #{tpu_custom_call.1} parent=1 // pred_fallthru
      _
    // Predicated region
    $region6: #{tpu_custom_call.1} parent=1 // pred_check
      _
    $region7: #{tpu_custom_call.1} parent=1 // pred_check_branch
      %21 = sbr.rel (0) target = $region9
    $region8: #{tpu_custom_call.1} parent=1 // pred_region
      %s23 = ssub.s32 256, 256
      %24 = vsyncadd [#allocation8], %s23
      %s26 = sshll.u32 [#allocation7], 4
      %s27 = int_to_ptr.vmem [resolvable:$true] %s26
      %29 = dma.hbm_to_vmem [thread:$0]  %s1, 256, %s27, [#allocation8]
    $region9: #{tpu_custom_call.1} parent=1 // pred_fallthru
      _
    // Predicated region
    $region10: #{tpu_custom_call.1} parent=1 // pred_check
      _
    $region11: #{tpu_custom_call.1} parent=1 // pred_check_branch
      %31 = sbr.rel (0) target = $region13
    $region12: #{tpu_custom_call.1} parent=1 // pred_region
      %32 = dma.done [#allocation5], 256
    $region13: #{tpu_custom_call.1} parent=1 // pred_fallthru
      _
    // Predicated region
    $region14: #{tpu_custom_call.1} parent=1 // pred_check
      _
    $region15: #{tpu_custom_call.1} parent=1 // pred_check_branch
      %34 = sbr.rel (0) target = $region17
    $region16: #{tpu_custom_call.1} parent=1 // pred_region
      %35 = dma.done [#allocation8], 256
    $region17: #{tpu_custom_call.1} parent=1 // pred_fallthru
      _
    %p36 = scmp.eq.s32.totalorder 0, 0
    // Predicated region
    $region18: #{tpu_custom_call.1} parent=1 // pred_check
      %p37 = pneg %p36
    $region19: #{tpu_custom_call.1} parent=1 // pred_check_branch
      %39 = sbr.rel (%p37) target = $region21
    $region20: #{tpu_custom_call.1} parent=1 // pred_region
      %40 = vst [vmem:[#allocation2] sm:$0xff] 0.0
      %41 = vst [vmem:[#allocation2 + $0x8] sm:$0xff] 0.0
      %42 = vst [vmem:[#allocation3] sm:$0xff] 0.0
      %43 = vst [vmem:[#allocation3 + $0x8] sm:$0xff] 0.0
    $region21: #{tpu_custom_call.1} parent=1 // pred_fallthru
      _
    %v44 = vld [vmem:[#allocation4] sm:$0xff]
    %v45 = vld [vmem:[#allocation4 + $0x8] sm:$0xff]
    %v46 = vld [vmem:[#allocation7] sm:$0xff]
    %v47 = vld [vmem:[#allocation7 + $0x8] sm:$0xff]
    %v48 = vsub.f32 %v46, %v44
    %v49 = vsub.f32 %v47, %v45
    %v50 = vand.u32 2147483647, %v48
    %v51 = vand.u32 2147483647, %v49
    %v52 = vrsqrt.pop %v50
    %v53 = vmul.f32 %v50, %v52
    %vm54 = vcmp.eq.f32.partialorder %v50, inf
    %v55 = vsel %vm54, %v50, %v53
    %vm56 = vcmp.eq.f32.partialorder %v50, 0.0
    %v57 = vand.u32 %v50, 2147483648
    %v58 = vsel %vm56, %v57, %v55
    %v59 = vrsqrt.pop %v51
    %v60 = vmul.f32 %v51, %v59
    %vm61 = vcmp.eq.f32.partialorder %v51, inf
    %v62 = vsel %vm61, %v51, %v60
    %vm63 = vcmp.eq.f32.partialorder %v51, 0.0
    %v64 = vand.u32 %v51, 2147483648
    %v65 = vsel %vm63, %v64, %v62
    %v66 = vmul.f32 %v50, %v58
    %v67 = vmul.f32 %v51, %v65
    %v68 = vld [vmem:[#allocation2] sm:$0xff]
    %v69 = vld [vmem:[#allocation2 + $0x8] sm:$0xff]
    %v70 = vadd.f32 %v68, %v50
    %v71 = vadd.f32 %v69, %v51
    %72 = vst [vmem:[#allocation2] sm:$0xff] %v70
    %73 = vst [vmem:[#allocation2 + $0x8] sm:$0xff] %v71
    %v74 = vld [vmem:[#allocation3] sm:$0xff]
    %v75 = vld [vmem:[#allocation3 + $0x8] sm:$0xff]
    %v76 = vadd.f32 %v74, %v66
    %v77 = vadd.f32 %v75, %v67
    %78 = vst [vmem:[#allocation3] sm:$0xff] %v76
    %79 = vst [vmem:[#allocation3 + $0x8] sm:$0xff] %v77
    // Predicated region
    $region22: #{tpu_custom_call.1} parent=1 // pred_check
      %p80 = pneg %p36
    $region23: #{tpu_custom_call.1} parent=1 // pred_check_branch
      %82 = sbr.rel (%p80) target = $region25
    $region24: #{tpu_custom_call.1} parent=1 // pred_region
      %v83 = vld [vmem:[#allocation2] sm:$0xff]
      %v84 = vld [vmem:[#allocation2 + $0x8] sm:$0xff]
      %v85 = vadd.f32 %v83, %v84
      %86 = vadd.xlane.f32.xlu0 %v85
      %v87 = vpop.xlane.xlu0 %86
      %v88 = vrot.slane %v87, 4
      %v89 = vadd.f32 %v87, %v88
      %v90 = vrot.slane %v89, 2
      %v91 = vadd.f32 %v89, %v90
      %v92 = vrot.slane %v91, 1
      %v93 = vadd.f32 %v91, %v92
      %s94 = vtos %v93
      %v95 = vlaneseq
      %v96 = vshrl.u32 %v95, 7
      %v97 = vlaneseq
      %v98 = vand.u32 %v97, 127
      %vm99 = vcmp.eq.s32.totalorder %v96, 0
      %vm100 = vcmp.eq.s32.totalorder %v98, 0
      %vm101 = vmand %vm99, %vm100
      %v102 = vstv %s94
      %v103 = vsel %vm101, %v102, 0.0
      %v104 = vld [vmem:[#allocation3] sm:$0xff]
      %v105 = vld [vmem:[#allocation3 + $0x8] sm:$0xff]
      %v106 = vadd.f32 %v104, %v105
      %107 = vadd.xlane.f32.xlu0 %v106
      %v108 = vpop.xlane.xlu0 %107
      %v109 = vrot.slane %v108, 4
      %v110 = vadd.f32 %v108, %v109
      %v111 = vrot.slane %v110, 2
      %v112 = vadd.f32 %v110, %v111
      %v113 = vrot.slane %v112, 1
      %v114 = vadd.f32 %v112, %v113
      %s115 = vtos %v114
      %vm116 = vcmp.eq.s32.totalorder %v98, 1
      %vm117 = vmand %vm99, %vm116
      %v118 = vstv %s115
      %v119 = vsel %vm117, %v118, 0.0
      %v120 = vadd.f32 %v103, %v119
      %121 = vst [vmem:[#allocation9] sm:$0xff] %v120
    $region25: #{tpu_custom_call.1} parent=1 // pred_fallthru
      _
    // Predicated region
    $region26: #{tpu_custom_call.1} parent=1 // pred_check
      _
    $region27: #{tpu_custom_call.1} parent=1 // pred_check_branch
      %123 = sbr.rel (0) target = $region29
    $region28: #{tpu_custom_call.1} parent=1 // pred_region
      %s125 = ssub.s32 128, 128
      %126 = vsyncadd [#allocation6], %s125
      %s128 = sshll.u32 [#allocation9], 4
      %s129 = int_to_ptr.vmem [resolvable:$true] %s128
      %131 = dma.vmem_to_hbm [thread:$0]  %s129, 128, %s2, [#allocation6]
    $region29: #{tpu_custom_call.1} parent=1 // pred_fallthru
      _
    // Predicated region
    $region30: #{tpu_custom_call.1} parent=1 // pred_check
      _
    $region31: #{tpu_custom_call.1} parent=1 // pred_check_branch
      %133 = sbr.rel (0) target = $region33
    $region32: #{tpu_custom_call.1} parent=1 // pred_region
      %134 = dma.done [#allocation6], 128
    $region33: #{tpu_custom_call.1} parent=1 // pred_fallthru
      _
    %135 = vsyncpa [#allocation5], 1
    %136 = vsyncpa [#allocation8], 1
    %137 = vsyncpa [#allocation6], 1

</llo_original>
